<compile_context>
chip_gen: v7x
topology: tpu7x:2x2x1
jax: 0.10.0
libtpu: 0.0.40
codegen_flags: <defaults>
</compile_context>

<pallas_src>
import functools

import jax
import jax.numpy as jnp
from jax.experimental import pallas as pl
from jax.experimental.pallas import tpu as pltpu

LANE = 128                 # vreg lane width
SUBLANE = 8                # vreg sublane count (f32)
TARGET_BLOCK_ROWS = 2048   # 2048 x 128 f32 = 1 MiB per input per pipeline buffer
FUSED_MAX_ROWS = 2048      # whole-slab single-call fast path up to 2048 x 128 elems


def _num_core_splits():
    """2-way leading split only on 2-TensorCore chips (v7x); v5e/v6e have 1 TC."""
    try:
        kind = jax.devices()[0].device_kind.lower()
    except Exception:
        return 1
    return 2 if ("v7" in kind or "7x" in kind) else 1


def _as_lane_slab(x):
    """View x as a lane-dense (rows, 128) slab; zero-copy when size % 128 == 0."""
    n = x.size
    flat = x.reshape(-1)
    if n % LANE != 0:
        # TODO(synk): ragged lane tails still take a jnp.pad copy; zero padding
        # is exactly neutral for this loss (|0-0| adds nothing to max or sum,
        # and the mean divides by the true element count).
        flat = jnp.pad(flat, (0, LANE - n % LANE))
    return flat.reshape(-1, LANE)


def _berhu_ref(pred, target):
    """Pure-JAX reference (matches the PyTorch module)."""
    pred = pred.astype(jnp.float32)
    target = target.astype(jnp.float32)
    diff = jnp.abs(target - pred)
    c = 0.2 * jnp.max(diff)
    loss1 = jnp.where(diff < c, diff, 0.0)
    diff2 = diff * diff
    c2 = c * c
    loss2 = jnp.where(diff2 > c2, diff2 + c2, 0.0) / (2.0 * c)
    return jnp.mean(loss1 + loss2)


# ---------------------------------------------------------------------------
# Fused fast path: whole slab as a single VMEM block, one HBM read per input.
# ---------------------------------------------------------------------------
def _fused_kernel(p_ref, t_ref, o_ref):
    d = jnp.abs(t_ref[...].astype(jnp.float32) - p_ref[...].astype(jnp.float32))
    c = 0.2 * jnp.max(d)
    loss1 = jnp.where(d < c, d, 0.0)                        # strict <, like F.threshold
    d2 = d * d
    c2 = c * c
    loss2 = jnp.where(d2 > c2, d2 + c2, 0.0) * (0.5 / c)    # strict >
    o_ref[...] = jnp.sum(loss1 + loss2, axis=0, keepdims=True)


def _berhu_fused(P, T, n_true):
    rows = P.shape[0]
    partials = pl.pallas_call(
        _fused_kernel,
        out_shape=jax.ShapeDtypeStruct((1, LANE), jnp.float32),
        cost_estimate=pl.CostEstimate(
            flops=12 * rows * LANE, transcendentals=0,
            bytes_accessed=rows * LANE * (P.dtype.itemsize + T.dtype.itemsize)),
    )(P, T)
    return jnp.sum(partials) / jnp.float32(n_true)


# ---------------------------------------------------------------------------
# Tiled two-pass path for large inputs.
# ---------------------------------------------------------------------------
def _berhu_tiled(P, T, n_true):
    rows = P.shape[0]
    block_rows = min(rows, TARGET_BLOCK_ROWS)
    total_blocks = pl.cdiv(rows, block_rows)

    num_split = _num_core_splits()
    if total_blocks < num_split:
        num_split = 1
    blocks_per_split = pl.cdiv(total_blocks, num_split)
    need_clamp = num_split * blocks_per_split != total_blocks
    ragged_rows = rows % block_rows != 0
    need_mask = need_clamp or ragged_rows

    # (8, 128) whole-vreg accumulation when the tile height allows it; the
    # final sublane+lane reduce happens in JAX glue over the tiny partials.
    use_vreg_acc = block_rows % SUBLANE == 0
    acc_rows = SUBLANE if use_vreg_acc else 1

    if num_split == 1:
        grid = (total_blocks,)
        in_index = lambda i: (i, 0)
        out_index = lambda i: (0, 0)
        dim_sem = (pltpu.ARBITRARY,)
    else:
        grid = (num_split, blocks_per_split)
        if need_clamp:
            # Virtual blocks beyond the real range are clamped to the last real
            # block (in-bounds DMA) and fully masked inside the kernel.
            in_index = lambda p, i: (
                jnp.minimum(p * blocks_per_split + i, total_blocks - 1), 0)
        else:
            in_index = lambda p, i: (p * blocks_per_split + i, 0)
        out_index = lambda p, i: (p, 0)
        # CORE_PARALLEL actually shards the leading axis across the two v7x
        # TensorCores (plain "parallel" barely changes codegen).
        dim_sem = (getattr(pltpu, "CORE_PARALLEL", pltpu.PARALLEL), pltpu.ARBITRARY)

    inner_axis = len(grid) - 1
    tile_spec = pl.BlockSpec((block_rows, LANE), in_index)
    out_spec = pl.BlockSpec((acc_rows, LANE), out_index)
    out_shape = jax.ShapeDtypeStruct((num_split * acc_rows, LANE), jnp.float32)
    compiler_params = pltpu.CompilerParams(dimension_semantics=dim_sem)
    in_bytes = rows * LANE * (P.dtype.itemsize + T.dtype.itemsize)

    def linear_block():
        if num_split == 1:
            return pl.program_id(0)
        return pl.program_id(0) * blocks_per_split + pl.program_id(1)

    def row_mask(val):
        row_id = (linear_block() * block_rows
                  + jax.lax.broadcasted_iota(jnp.int32, val.shape, 0))
        return jnp.where(row_id < rows, val, 0.0)

    def reduce_tile(val, reducer):
        if use_vreg_acc:
            return reducer(val.reshape(block_rows // SUBLANE, SUBLANE, LANE), axis=0)
        return reducer(val, axis=0, keepdims=True)

    def abs_diff(p_ref, t_ref):
        return jnp.abs(t_ref[...].astype(jnp.float32)
                       - p_ref[...].astype(jnp.float32))

    def guarded(o_ref, body):
        """Init at inner step 0; mask only on the boundary / clamped block."""
        @pl.when(pl.program_id(inner_axis) == 0)
        def _():
            o_ref[...] = jnp.zeros_like(o_ref)

        if need_mask:
            edge = linear_block() >= total_blocks - 1

            @pl.when(jnp.logical_not(edge))
            def _():
                body(masked=False)

            @pl.when(edge)
            def _():
                body(masked=True)
        else:
            body(masked=False)

    # ---- pass 1: running max of |target - pred| -----------------------------
    def max_kernel(p_ref, t_ref, o_ref):
        def body(masked):
            d = abs_diff(p_ref, t_ref)
            if masked:
                d = row_mask(d)          # diffs >= 0, so 0-fill is neutral
            o_ref[...] = jnp.maximum(o_ref[...], reduce_tile(d, jnp.max))

        guarded(o_ref, body)

    max_partials = pl.pallas_call(
        max_kernel,
        out_shape=out_shape,
        grid_spec=pltpu.PrefetchScalarGridSpec(
            num_scalar_prefetch=0,
            grid=grid,
            in_specs=[tile_spec, tile_spec],
            out_specs=out_spec,
        ),
        compiler_params=compiler_params,
        cost_estimate=pl.CostEstimate(
            flops=3 * rows * LANE, transcendentals=0, bytes_accessed=in_bytes),
    )(P, T)

    # Mirrors `.data.cpu().numpy()`: c is just a detached scalar fed to pass 2.
    c = 0.2 * jnp.max(max_partials)
    scalars = jnp.stack([c, c * c, 0.5 / c]).astype(jnp.float32)   # [c, c^2, 1/(2c)]

    # ---- pass 2: partial sums of loss1 + loss2 ------------------------------
    def loss_kernel(s_ref, p_ref, t_ref, o_ref):
        def body(masked):
            c_s = s_ref[0]
            c2_s = s_ref[1]
            inv_2c = s_ref[2]
            d = abs_diff(p_ref, t_ref)
            loss1 = jnp.where(d < c_s, d, 0.0)                       # strict <
            d2 = d * d
            loss2 = jnp.where(d2 > c2_s, d2 + c2_s, 0.0) * inv_2c    # strict >
            l = loss1 + loss2
            if masked:
                l = row_mask(l)
            o_ref[...] = o_ref[...] + reduce_tile(l, jnp.sum)

        guarded(o_ref, body)

    sum_partials = pl.pallas_call(
        loss_kernel,
        out_shape=out_shape,
        grid_spec=pltpu.PrefetchScalarGridSpec(
            num_scalar_prefetch=0,
            grid=grid,
            in_specs=[
                pl.BlockSpec(memory_space=pltpu.MemorySpace.SMEM),  # [c, c^2, 1/(2c)]
                tile_spec,
                tile_spec,
            ],
            out_specs=out_spec,
        ),
        compiler_params=compiler_params,
        cost_estimate=pl.CostEstimate(
            flops=10 * rows * LANE, transcendentals=0, bytes_accessed=in_bytes),
    )(scalars, P, T)

    return jnp.sum(sum_partials) / jnp.float32(n_true)


def berhu_loss(pred, target, force_tiled=False):
    """BerHu loss. `force_tiled` (static) forces the large-input code path."""
    n_true = pred.size
    P = _as_lane_slab(pred)
    T = _as_lane_slab(target)
    if not force_tiled and P.shape[0] <= FUSED_MAX_ROWS:
        return _berhu_fused(P, T, n_true)
    return _berhu_tiled(P, T, n_true)


if __name__ == "__main__":
    key = jax.random.PRNGKey(0)
    k1, k2 = jax.random.split(key)
    # NCHW inputs, as the PyTorch module would receive.
    pred = jax.random.normal(k1, (2, 4, 16, 16), dtype=jnp.float32)
    target = jax.random.normal(k2, (2, 4, 16, 16), dtype=jnp.float32)

    ref = _berhu_ref(pred, target)

    # Fused single-call fast path (what small/medium inputs take).
    out = jax.block_until_ready(jax.jit(berhu_loss)(pred, target))
    assert jnp.allclose(out, ref, rtol=1e-4, atol=1e-6), (out, ref)

    # Tiled two-pass path (what large inputs take), forced on the same data.
    tiled_fn = jax.jit(functools.partial(berhu_loss, force_tiled=True))
    out_tiled = jax.block_until_ready(tiled_fn(pred, target))
    assert jnp.allclose(out_tiled, ref, rtol=1e-4, atol=1e-6), (out_tiled, ref)

    print("KERNEL_OK")
</pallas_src>

<mosaic_0001>
module attributes {stable_mosaic.version = 11 : i64} {
  func.func @_fused_kernel(%arg0: memref<16x128xf32, #tpu.memory_space<vmem>>, %arg1: memref<16x128xf32, #tpu.memory_space<vmem>>, %arg2: memref<1x128xf32, #tpu.memory_space<vmem>>) attributes {dimension_semantics = [], scalar_prefetch = 0 : i64, scratch_operands = 0 : i64, tpu.core_type = #tpu.core_type<tc>} {
    %c0 = arith.constant 0 : index
    %c0_0 = arith.constant 0 : index
    %0 = vector.load %arg1[%c0, %c0_0] : memref<16x128xf32, #tpu.memory_space<vmem>>, vector<16x128xf32>
    %c0_1 = arith.constant 0 : index
    %c0_2 = arith.constant 0 : index
    %1 = vector.load %arg0[%c0_1, %c0_2] : memref<16x128xf32, #tpu.memory_space<vmem>>, vector<16x128xf32>
    %2 = arith.subf %0, %1 : vector<16x128xf32>
    %3 = math.absf %2 : vector<16x128xf32>
    %4 = vector.shape_cast %3 : vector<16x128xf32> to vector<1x16x128xf32>
    %cst = arith.constant dense<0xFF800000> : vector<1xf32>
    %5 = vector.multi_reduction <maximumf>, %4, %cst [1, 2] : vector<1x16x128xf32> to vector<1xf32>
    %6 = vector.shape_cast %5 : vector<1xf32> to vector<1x1x1xf32>
    %7 = vector.extract %6[0, 0, 0] : f32 from vector<1x1x1xf32>
    %cst_3 = arith.constant 2.000000e-01 : f32
    %8 = arith.mulf %cst_3, %7 : f32
    %9 = vector.broadcast %8 : f32 to vector<16x128xf32>
    %10 = arith.cmpf olt, %3, %9 : vector<16x128xf32>
    %cst_4 = arith.constant 0.000000e+00 : f32
    %11 = vector.broadcast %cst_4 : f32 to vector<16x128xf32>
    %12 = arith.select %10, %3, %11 : vector<16x128xi1>, vector<16x128xf32>
    %13 = arith.mulf %3, %3 : vector<16x128xf32>
    %14 = arith.mulf %8, %8 : f32
    %15 = vector.broadcast %14 : f32 to vector<16x128xf32>
    %16 = arith.cmpf ogt, %13, %15 : vector<16x128xf32>
    %17 = vector.broadcast %14 : f32 to vector<16x128xf32>
    %18 = arith.addf %13, %17 : vector<16x128xf32>
    %cst_5 = arith.constant 0.000000e+00 : f32
    %19 = vector.broadcast %cst_5 : f32 to vector<16x128xf32>
    %20 = arith.select %16, %18, %19 : vector<16x128xi1>, vector<16x128xf32>
    %cst_6 = arith.constant 5.000000e-01 : f32
    %21 = arith.divf %cst_6, %8 : f32
    %22 = vector.broadcast %21 : f32 to vector<16x128xf32>
    %23 = arith.mulf %20, %22 : vector<16x128xf32>
    %24 = arith.addf %12, %23 : vector<16x128xf32>
    %cst_7 = arith.constant dense<0.000000e+00> : vector<128xf32>
    %25 = vector.multi_reduction <add>, %24, %cst_7 [0] : vector<16x128xf32> to vector<128xf32>
    %26 = vector.shape_cast %25 : vector<128xf32> to vector<1x128xf32>
    %c0_8 = arith.constant 0 : index
    %c0_9 = arith.constant 0 : index
    %27 = vector.load %arg2[%c0_8, %c0_9] : memref<1x128xf32, #tpu.memory_space<vmem>>, vector<1x128xf32>
    tpu.vector_store %arg2[%c0_8, %c0_9], %26 {strides = array<i32>} : memref<1x128xf32, #tpu.memory_space<vmem>>, vector<1x128xf32>,
    return
  }
}

</mosaic_0001>

<llo_original>
// kernel: berhu_loss.1
$region0: #{berhu_loss.1}
  #allocation0 [shape = 'u32[]', space=smem, size = 0x4, offset = 0x4, fixed_abs, tag = 'smem constant byte address 0x4 - core index']
  #allocation1 [shape = 'u32[144,128]{1,0:T(1,128)}', space=vmem, size = 0x12000, scoped, tag = 'internal scratch']
  %s0 = inlined_call_operand.vmem [shape: f32[16,128], index: 0, kind: input, shape index: {}]
  %s1 = inlined_call_operand.vmem [shape: f32[16,128], index: 1, kind: input, shape index: {}]
  %s2 = inlined_call_operand.vmem [shape: f32[1,128], index: 2, kind: output, shape index: {}]
  %s3 = sld [smem:[#allocation0]]
  $region18: #{berhu_loss.1} parent=0
    _
  %s5 = ssub.s32 1, %s3
  %s6 = scalar_select 0, %s5, %s3
  // Predicated region
  $region2: #{berhu_loss.1} parent=0 // pred_check
    _
  $region3: #{berhu_loss.1} parent=0 // pred_check_branch
    %8 = sbr.rel (0) target = $region5
  $region4: #{berhu_loss.1} parent=0 // pred_region
    _
  $region5: #{berhu_loss.1} parent=0 // pred_fallthru
    _
  // Predicated region
  $region6: #{berhu_loss.1} parent=0 // pred_check
    _
  $region7: #{berhu_loss.1} parent=0 // pred_check_branch
    %10 = sbr.rel (0) target = $region9
  $region8: #{berhu_loss.1} parent=0 // pred_region
    _
  $region9: #{berhu_loss.1} parent=0 // pred_fallthru
    _
  %v11 = vld [vmem:[%s1] sm:$0xff]
  %v12 = vld [vmem:[%s1 + $0x8] sm:$0xff]
  %v13 = vld [vmem:[%s0] sm:$0xff]
  %v14 = vld [vmem:[%s0 + $0x8] sm:$0xff]
  %v15 = vsub.f32 %v11, %v13
  %v16 = vsub.f32 %v12, %v14
  %v17 = vand.u32 2147483647, %v15
  %v18 = vand.u32 2147483647, %v16
  %v19 = vmax.f32 %v17, %v18
  %20 = vmax.xlane.f32.xlu0 %v19
  %v21 = vpop.xlane.xlu0 %20
  %v22 = vrot.slane %v21, 4
  %v23 = vmax.f32 %v21, %v22
  %v24 = vrot.slane %v23, 2
  %v25 = vmax.f32 %v23, %v24
  %v26 = vrot.slane %v25, 1
  %v27 = vmax.f32 %v25, %v26
  %s28 = vtos %v27
  %s29 = smul.f32 %s28, 0.2
  %v30 = vstv %s29
  %vm31 = vcmp.lt.f32.partialorder %v17, %v30
  %vm32 = vcmp.lt.f32.partialorder %v18, %v30
  %v33 = vsel %vm31, %v17, 0.0
  %v34 = vsel %vm32, %v18, 0.0
  %v35 = vmul.f32 %v17, %v17
  %v36 = vmul.f32 %v18, %v18
  %s37 = smul.f32 %s29, %s29
  %v38 = vstv %s37
  %vm39 = vcmp.gt.f32.partialorder %v35, %v38
  %vm40 = vcmp.gt.f32.partialorder %v36, %v38
  %v41 = vadd.f32 %v35, %v38
  %v42 = vadd.f32 %v36, %v38
  %v43 = vsel %vm39, %v41, 0.0
  %v44 = vsel %vm40, %v42, 0.0
  %v45 = vstv %s29
  %v46 = vrcp.pop %v45
  %s47 = vtos %v46
  %s48 = smul.f32 0.5, %s47
  %v49 = vstv %s48
  %v50 = vmul.f32 %v43, %v49
  %v51 = vmul.f32 %v44, %v49
  %v52 = vadd.f32 %v33, %v50
  %v53 = vadd.f32 %v34, %v51
  %v54 = vadd.f32 %v52, %v53
  %v55 = vrot.slane %v54, 4
  %v56 = vadd.f32 %v54, %v55
  %v57 = vrot.slane %v56, 2
  %v58 = vadd.f32 %v56, %v57
  %v59 = vrot.slane %v58, 1
  %v60 = vadd.f32 %v58, %v59
  %61 = vst [vmem:[%s2] sm:$0x1] %v60
  // Predicated region
  $region10: #{berhu_loss.1} parent=0 // pred_check
    _
  $region11: #{berhu_loss.1} parent=0 // pred_check_branch
    %63 = sbr.rel (0) target = $region13
  $region12: #{berhu_loss.1} parent=0 // pred_region
    _
  $region13: #{berhu_loss.1} parent=0 // pred_fallthru
    _
  // Predicated region
  $region14: #{berhu_loss.1} parent=0 // pred_check
    _
  $region15: #{berhu_loss.1} parent=0 // pred_check_branch
    %65 = sbr.rel (0) target = $region17
  $region16: #{berhu_loss.1} parent=0 // pred_region
    _
  $region17: #{berhu_loss.1} parent=0 // pred_fallthru
    _

</llo_original>
